<compile_context>
chip_gen: v7x
topology: tpu7x:2x2x1
jax: 0.10.0
libtpu: 0.0.40
codegen_flags: <defaults>
</compile_context>

<pallas_src>
import jax
import jax.numpy as jnp
from jax.experimental import pallas as pl
from jax.experimental.pallas import tpu as pltpu


def _round_up(x, m):
    return (x + m - 1) // m * m


def bag_of_ngrams_kernel(ids_ref, lens_ref, emb_ref, out_ref):
    TB, S = ids_ref.shape          # batch tile, full (short) sequence
    TV, _ = emb_ref.shape          # vocab tile, padded embedding dim
    k = pl.program_id(1)           # vocab-tile (reduction) index

    # Output block is resident across the vocab axis: zero it on step 0.
    @pl.when(k == 0)
    def _():
        out_ref[...] = jnp.zeros_like(out_ref)

    ids = ids_ref[...]             # [TB, S] int32
    lens = lens_ref[...]           # [TB, 1] int32

    # Per-position weight: 1/len inside the valid prefix, 0 elsewhere.
    # Exact divide (not approx reciprocal) to hold the 1e-5 tolerance.
    pos = jax.lax.broadcasted_iota(jnp.int32, (TB, S), 1)
    inv_len = 1.0 / lens.astype(jnp.float32)                  # [TB, 1]
    w_pos = jnp.where(pos < lens, inv_len, 0.0)               # [TB, S] f32

    # Weighted-count matrix for this vocab tile:
    #   W[b, tv] = sum_s w_pos[b, s] * (ids[b, s] == k*TV + tv)
    # 3-D iota + compare on the VPU, sublane reduce over S on the XLU.
    local = ids - k * TV                                      # [TB, S]
    tv_iota = jax.lax.broadcasted_iota(jnp.int32, (TB, S, TV), 2)
    hit = tv_iota == local[:, :, None]                        # [TB, S, TV] bool
    W = jnp.sum(jnp.where(hit, w_pos[:, :, None], 0.0), axis=1)  # [TB, TV] f32

    # Single MXU matmul per (batch tile, vocab tile); f32 accumulation.
    out_ref[...] += jnp.dot(W, emb_ref[...], preferred_element_type=jnp.float32)


def _choose_tiles(B, S, V, D):
    D_pad = _round_up(D, 128)

    # Batch tile: up to 64 rows (more MXU rows per matmul for big batches),
    # but keep the [TB, S, TV] one-hot sublane footprint modest for long S.
    TB = min(64, _round_up(B, 8))
    if S > 128:
        TB = 8
    TB = max(8, (TB // 8) * 8)
    B_pad = _round_up(B, TB)

    # Vocab tile: cap so (a) the streamed E tile is <= ~2 MiB per buffer and
    # (b) the transient [TB, S, TV] one-hot is <= ~1 MiB.
    tv_cap_emb = (2 << 20) // (D_pad * 4)
    tv_cap_hit = (1 << 20) // max(1, TB * S * 4)
    TV = min(512, tv_cap_emb, tv_cap_hit, _round_up(V, 8))
    TV = max(8, (TV // 8) * 8)
    V_pad = _round_up(V, TV)

    return TB, B_pad, TV, V_pad, D_pad


def bag_of_ngrams(ngram_ids, ngram_lengths, embedding_table):
    """ngram_ids: [B, S] int; ngram_lengths: [B] int; embedding_table: [V, D] f32."""
    B, S = ngram_ids.shape
    V, D = embedding_table.shape

    TB, B_pad, TV, V_pad, D_pad = _choose_tiles(B, S, V, D)

    # Layout plumbing in the wrapper (padded, sliced afterwards).
    ids = jnp.zeros((B_pad, S), jnp.int32).at[:B].set(ngram_ids.astype(jnp.int32))
    # Padded batch rows get length 1 (avoids 0-divide; rows are sliced away).
    lens = jnp.ones((B_pad, 1), jnp.int32).at[:B, 0].set(
        ngram_lengths.astype(jnp.int32))
    emb = jnp.zeros((V_pad, D_pad), jnp.float32).at[:V, :D].set(
        embedding_table.astype(jnp.float32))

    grid = (B_pad // TB, V_pad // TV)

    out = pl.pallas_call(
        bag_of_ngrams_kernel,
        out_shape=jax.ShapeDtypeStruct((B_pad, D_pad), jnp.float32),
        grid_spec=pltpu.PrefetchScalarGridSpec(
            num_scalar_prefetch=0,
            grid=grid,
            in_specs=[
                pl.BlockSpec((TB, S), lambda i, k: (i, 0)),        # ids
                pl.BlockSpec((TB, 1), lambda i, k: (i, 0)),        # lengths
                pl.BlockSpec((TV, D_pad), lambda i, k: (k, 0)),    # E tile (streamed)
            ],
            out_specs=pl.BlockSpec((TB, D_pad), lambda i, k: (i, 0)),
        ),
        compiler_params=pltpu.CompilerParams(
            dimension_semantics=("parallel", "arbitrary"),
            vmem_limit_bytes=32 << 20,   # explicit; safe on v5e/v6e/v7x
        ),
    )(ids, lens, emb)

    return out[:B, :D]


def reference(ngram_ids, ngram_lengths, embedding_table):
    emb = embedding_table[ngram_ids]                                   # [B, S, D]
    S = ngram_ids.shape[1]
    mask = (jnp.arange(S)[None, :] < ngram_lengths[:, None]).astype(jnp.float32)
    emb = emb * mask[..., None]
    return jnp.sum(emb, axis=1) / ngram_lengths.astype(jnp.float32)[:, None]


if __name__ == "__main__":
    vocab_size = 64
    embedding_size = 32
    batch = 4
    max_seq_len = 8

    key = jax.random.PRNGKey(0)
    k_emb, k_ids, k_len = jax.random.split(key, 3)

    # Deterministic "parameters" (nn.Embedding weight analogue).
    embedding_table = jax.random.normal(k_emb, (vocab_size, embedding_size),
                                        dtype=jnp.float32)

    ngram_ids = jax.random.randint(k_ids, (batch, max_seq_len), 0, vocab_size,
                                   dtype=jnp.int32)
    ngram_lengths = jax.random.randint(k_len, (batch,), 1, max_seq_len + 1,
                                       dtype=jnp.int32)

    out = bag_of_ngrams(ngram_ids, ngram_lengths, embedding_table)
    out = jax.block_until_ready(out)

    ref = reference(ngram_ids, ngram_lengths, embedding_table)
    assert out.shape == (batch, embedding_size)
    assert jnp.allclose(out, ref, atol=1e-5, rtol=1e-5), "mismatch vs reference"

    print("KERNEL_OK")
</pallas_src>

<mosaic_0001>
module attributes {stable_mosaic.version = 11 : i64} {
  func.func @bag_of_ngrams_kernel(%arg0: i32, %arg1: i32, %arg2: memref<8x8xi32, #tpu.memory_space<vmem>>, %arg3: memref<8x1xi32, #tpu.memory_space<vmem>>, %arg4: memref<64x128xf32, #tpu.memory_space<vmem>>, %arg5: memref<8x128xf32, #tpu.memory_space<vmem>>) attributes {dimension_semantics = [#tpu.dimension_semantics<parallel>, #tpu.dimension_semantics<arbitrary>], iteration_bounds = array<i64: 1, 1>, scalar_prefetch = 0 : i64, scratch_operands = 0 : i64, tpu.core_type = #tpu.core_type<tc>, window_params = [{transform_indices = @transform_0, window_bounds = array<i64: 8, 8>}, {transform_indices = @transform_1, window_bounds = array<i64: 8, 1>}, {transform_indices = @transform_2, window_bounds = array<i64: 64, 128>}, {transform_indices = @transform_3, window_bounds = array<i64: 8, 128>}]} {
    %c0_i32 = arith.constant 0 : i32
    %0 = arith.cmpi eq, %arg1, %c0_i32 : i32
    %1 = arith.extui %0 : i1 to i32
    %c0_i32_0 = arith.constant 0 : i32
    %2 = arith.cmpi ne, %1, %c0_i32_0 : i32
    scf.if %2 {
      %cst_14 = arith.constant 0.000000e+00 : f32
      %33 = vector.broadcast %cst_14 : f32 to vector<8x128xf32>
      %c0_15 = arith.constant 0 : index
      %c0_16 = arith.constant 0 : index
      %34 = vector.load %arg5[%c0_15, %c0_16] : memref<8x128xf32, #tpu.memory_space<vmem>>, vector<8x128xf32>
      tpu.vector_store %arg5[%c0_15, %c0_16], %33 {strides = array<i32>} : memref<8x128xf32, #tpu.memory_space<vmem>>, vector<8x128xf32>,
    } else {
    }
    %c0 = arith.constant 0 : index
    %c0_1 = arith.constant 0 : index
    %3 = vector.load %arg2[%c0, %c0_1] : memref<8x8xi32, #tpu.memory_space<vmem>>, vector<8x8xi32>
    %c0_2 = arith.constant 0 : index
    %c0_3 = arith.constant 0 : index
    %4 = vector.load %arg3[%c0_2, %c0_3] : memref<8x1xi32, #tpu.memory_space<vmem>>, vector<8x1xi32>
    %5 = tpu.iota {dimensions = array<i32: 1>} : vector<8x8xi32>
    %6 = arith.sitofp %4 : vector<8x1xi32> to vector<8x1xf32>
    %cst = arith.constant 1.000000e+00 : f32
    %7 = vector.broadcast %cst : f32 to vector<8x1xf32>
    %8 = arith.divf %7, %6 : vector<8x1xf32>
    %9 = vector.broadcast %4 : vector<8x1xi32> to vector<8x8xi32>
    %10 = arith.cmpi slt, %5, %9 : vector<8x8xi32>
    %cst_4 = arith.constant 0.000000e+00 : f32
    %11 = vector.shape_cast %8 : vector<8x1xf32> to vector<8x1xf32>
    %12 = vector.broadcast %11 : vector<8x1xf32> to vector<8x8xf32>
    %13 = vector.broadcast %cst_4 : f32 to vector<8x8xf32>
    %14 = arith.select %10, %12, %13 : vector<8x8xi1>, vector<8x8xf32>
    %c64_i32 = arith.constant 64 : i32
    %15 = arith.muli %arg1, %c64_i32 : i32
    %16 = vector.broadcast %15 : i32 to vector<8x8xi32>
    %17 = arith.subi %3, %16 : vector<8x8xi32>
    %18 = tpu.iota {dimensions = array<i32: 2>} : vector<8x8x64xi32>
    %19 = vector.shape_cast %17 : vector<8x8xi32> to vector<8x8x1xi32>
    %20 = vector.broadcast %19 : vector<8x8x1xi32> to vector<8x8x64xi32>
    %21 = arith.cmpi eq, %18, %20 : vector<8x8x64xi32>
    %22 = vector.shape_cast %14 : vector<8x8xf32> to vector<8x8x1xf32>
    %cst_5 = arith.constant 0.000000e+00 : f32
    %23 = vector.shape_cast %22 : vector<8x8x1xf32> to vector<8x8x1xf32>
    %24 = vector.broadcast %23 : vector<8x8x1xf32> to vector<8x8x64xf32>
    %25 = vector.broadcast %cst_5 : f32 to vector<8x8x64xf32>
    %26 = arith.select %21, %24, %25 : vector<8x8x64xi1>, vector<8x8x64xf32>
    %cst_6 = arith.constant dense<0.000000e+00> : vector<8x64xf32>
    %27 = vector.multi_reduction <add>, %26, %cst_6 [1] : vector<8x8x64xf32> to vector<8x64xf32>
    %c0_7 = arith.constant 0 : index
    %c0_8 = arith.constant 0 : index
    %28 = vector.load %arg5[%c0_7, %c0_8] : memref<8x128xf32, #tpu.memory_space<vmem>>, vector<8x128xf32>
    %c0_9 = arith.constant 0 : index
    %c0_10 = arith.constant 0 : index
    %29 = vector.load %arg4[%c0_9, %c0_10] : memref<64x128xf32, #tpu.memory_space<vmem>>, vector<64x128xf32>
    %cst_11 = arith.constant dense<0.000000e+00> : vector<8x128xf32>
    %30 = tpu.matmul %27, %29, %cst_11 {dimension_numbers = #tpu.dot_dimension_numbers<[1], [0], [0], [1], [0, 0, 1, 1], [], []>} : vector<8x64xf32>, vector<64x128xf32>, vector<8x128xf32> -> vector<8x128xf32>
    %31 = arith.addf %28, %30 : vector<8x128xf32>
    %c0_12 = arith.constant 0 : index
    %c0_13 = arith.constant 0 : index
    %32 = vector.load %arg5[%c0_12, %c0_13] : memref<8x128xf32, #tpu.memory_space<vmem>>, vector<8x128xf32>
    tpu.vector_store %arg5[%c0_12, %c0_13], %31 {strides = array<i32>} : memref<8x128xf32, #tpu.memory_space<vmem>>, vector<8x128xf32>,
    return
  }
  func.func @transform_0(%arg0: i32, %arg1: i32) -> (i32, i32) {
    %c0_i32 = arith.constant 0 : i32
    %c0_i32_0 = arith.constant 0 : i32
    return %arg0, %c0_i32 : i32, i32
  }
  func.func @transform_1(%arg0: i32, %arg1: i32) -> (i32, i32) {
    %c0_i32 = arith.constant 0 : i32
    %c0_i32_0 = arith.constant 0 : i32
    return %arg0, %c0_i32 : i32, i32
  }
  func.func @transform_2(%arg0: i32, %arg1: i32) -> (i32, i32) {
    %c0_i32 = arith.constant 0 : i32
    %c0_i32_0 = arith.constant 0 : i32
    return %arg1, %c0_i32 : i32, i32
  }
  func.func @transform_3(%arg0: i32, %arg1: i32) -> (i32, i32) {
    %c0_i32 = arith.constant 0 : i32
    %c0_i32_0 = arith.constant 0 : i32
    return %arg0, %c0_i32 : i32, i32
  }
}

</mosaic_0001>

<llo_original>
// kernel: tpu_custom_call.1
$region0: #{tpu_custom_call.1}
  #allocation0 [shape = 'u32[]', space=smem, size = 0x4, offset = 0x4, fixed_abs, tag = 'smem constant byte address 0x4 - core index']
  #allocation1 [shape = 'u32[144,128]{1,0:T(1,128)}', space=vmem, size = 0x12000, scoped, tag = 'internal scratch']
  %s0 = inlined_call_operand.vmem [shape: s32[8,8], index: 0, kind: input, shape index: {}]
  %s1 = inlined_call_operand.vmem [shape: s32[8,1], index: 1, kind: input, shape index: {}]
  %s2 = inlined_call_operand.hbm [shape: f32[64,128], index: 2, kind: input, shape index: {}]
  %s3 = inlined_call_operand.hbm [shape: f32[8,128], index: 3, kind: output, shape index: {}]
  %s4 = sld [smem:[#allocation0]]
  $region30: #{tpu_custom_call.1} parent=0
    _
  %s6 = ssub.s32 1, %s4
  %s7 = scalar_select 0, %s6, %s4
  $region1: #{tpu_custom_call.1} parent=0
    #allocation2 [shape = 'u8[32768]{0}', space=vmem, size = 0x8000, scoped, tag = 'input window, operand 2, single buffered']
    #allocation3 [shape = 's32[1]{0}', space=sflag, size = 0x4, scoped, tag = 'scoped memory for tpu_custom_call.1']
    #allocation4 [shape = 's32[1]{0}', space=sflag, size = 0x4, scoped, tag = 'scoped memory for tpu_custom_call.1']
    #allocation5 [shape = 'u8[4096]{0}', space=vmem, size = 0x1000, scoped, tag = 'output window, operand 0, single buffered']
    %8 = vsyncpa [#allocation3], 0
    %9 = vsyncpa [#allocation4], 0
    // Predicated region
    $region2: #{tpu_custom_call.1} parent=1 // pred_check
      _
    $region3: #{tpu_custom_call.1} parent=1 // pred_check_branch
      %11 = sbr.rel (0) target = $region5
    $region4: #{tpu_custom_call.1} parent=1 // pred_region
      _
    $region5: #{tpu_custom_call.1} parent=1 // pred_fallthru
      _
    // Predicated region
    $region6: #{tpu_custom_call.1} parent=1 // pred_check
      _
    $region7: #{tpu_custom_call.1} parent=1 // pred_check_branch
      %13 = sbr.rel (0) target = $region9
    $region8: #{tpu_custom_call.1} parent=1 // pred_region
      _
    $region9: #{tpu_custom_call.1} parent=1 // pred_fallthru
      _
    // Predicated region
    $region10: #{tpu_custom_call.1} parent=1 // pred_check
      _
    $region11: #{tpu_custom_call.1} parent=1 // pred_check_branch
      %15 = sbr.rel (0) target = $region13
    $region12: #{tpu_custom_call.1} parent=1 // pred_region
      %s17 = ssub.s32 1024, 1024
      %18 = vsyncadd [#allocation3], %s17
      %s19 = sshll.u32 [#allocation2], 4
      %s20 = int_to_ptr.vmem [resolvable:$true] %s19
      %25 = dma.hbm_to_vmem [thread:$0]  %s2, 1024, %s20, [#allocation3], 128, 128, 8
    $region13: #{tpu_custom_call.1} parent=1 // pred_fallthru
      _
    // Predicated region
    $region14: #{tpu_custom_call.1} parent=1 // pred_check
      _
    $region15: #{tpu_custom_call.1} parent=1 // pred_check_branch
      %27 = sbr.rel (0) target = $region17
    $region16: #{tpu_custom_call.1} parent=1 // pred_region
      %28 = dma.done [#allocation3], 1024
    $region17: #{tpu_custom_call.1} parent=1 // pred_fallthru
      _
    %p29 = scmp.eq.s32.totalorder 0, 0
    // Predicated region
    $region18: #{tpu_custom_call.1} parent=1 // pred_check
      %p30 = pneg %p29
    $region19: #{tpu_custom_call.1} parent=1 // pred_check_branch
      %32 = sbr.rel (%p30) target = $region21
    $region20: #{tpu_custom_call.1} parent=1 // pred_region
      %33 = vst [vmem:[#allocation5] sm:$0xff] 0.0
    $region21: #{tpu_custom_call.1} parent=1 // pred_fallthru
      _
    %v34 = vld [vmem:[%s0] sm:$0xff]
    %v35 = vld [vmem:[%s1] sm:$0xff]
    %v36 = vlaneseq
    %v37 = vand.u32 %v36, 127
    %v38 = vcvt.s32.f32 %v35
    %v39 = vrcp.pop %v38
    %v40 = vmul.f32 1.0, %v39
    %41 = vset.pattern.permute.xlu0 0
    %42 = vperm.xlu0 %41, %v35
    %v43 = vpop.permute.xlu0 %42
    %vm44 = vcmp.lt.s32.totalorder %v37, %v43
    %46 = vset.pattern.permute.xlu0 0
    %47 = vperm.xlu0 %46, %v40
    %v48 = vpop.permute.xlu0 %47
    %v50 = vsel %vm44, %v48, 0.0
    %s51 = smul.u32 0, 64
    %v52 = vstv %s51
    %v53 = vsub.s32 %v34, %v52
    %v54 = vlaneseq
    %v55 = vshrl.u32 %v54, 7
    %v56 = vsub.s32 0, %v55
    %v57 = vrot.slane %v53, %v56
    %59 = vbcast.lane.b32.xlu0 %v57, 256
    %v60 = vpop.permute.xlu0 %59
    %v61 = vlaneseq
    %v62 = vshrl.u32 %v61, 7
    %v63 = vsub.s32 1, %v62
    %v64 = vrot.slane %v53, %v63
    %66 = vbcast.lane.b32.xlu0 %v64, 256
    %v67 = vpop.permute.xlu0 %66
    %v68 = vlaneseq
    %v69 = vshrl.u32 %v68, 7
    %v70 = vsub.s32 2, %v69
    %v71 = vrot.slane %v53, %v70
    %73 = vbcast.lane.b32.xlu0 %v71, 256
    %v74 = vpop.permute.xlu0 %73
    %v75 = vlaneseq
    %v76 = vshrl.u32 %v75, 7
    %v77 = vsub.s32 3, %v76
    %v78 = vrot.slane %v53, %v77
    %80 = vbcast.lane.b32.xlu0 %v78, 256
    %v81 = vpop.permute.xlu0 %80
    %v82 = vlaneseq
    %v83 = vshrl.u32 %v82, 7
    %v84 = vsub.s32 4, %v83
    %v85 = vrot.slane %v53, %v84
    %87 = vbcast.lane.b32.xlu0 %v85, 256
    %v88 = vpop.permute.xlu0 %87
    %v89 = vlaneseq
    %v90 = vshrl.u32 %v89, 7
    %v91 = vsub.s32 5, %v90
    %v92 = vrot.slane %v53, %v91
    %94 = vbcast.lane.b32.xlu0 %v92, 256
    %v95 = vpop.permute.xlu0 %94
    %v96 = vlaneseq
    %v97 = vshrl.u32 %v96, 7
    %v98 = vsub.s32 6, %v97
    %v99 = vrot.slane %v53, %v98
    %101 = vbcast.lane.b32.xlu0 %v99, 256
    %v102 = vpop.permute.xlu0 %101
    %v103 = vlaneseq
    %v104 = vshrl.u32 %v103, 7
    %v105 = vsub.s32 7, %v104
    %v106 = vrot.slane %v53, %v105
    %108 = vbcast.lane.b32.xlu0 %v106, 256
    %v109 = vpop.permute.xlu0 %108
    %vm110 = vcmp.eq.s32.totalorder %v37, %v60
    %vm111 = vcmp.eq.s32.totalorder %v37, %v67
    %vm112 = vcmp.eq.s32.totalorder %v37, %v74
    %vm113 = vcmp.eq.s32.totalorder %v37, %v81
    %vm114 = vcmp.eq.s32.totalorder %v37, %v88
    %vm115 = vcmp.eq.s32.totalorder %v37, %v95
    %vm116 = vcmp.eq.s32.totalorder %v37, %v102
    %vm117 = vcmp.eq.s32.totalorder %v37, %v109
    %v118 = vlaneseq
    %v119 = vshrl.u32 %v118, 7
    %v120 = vsub.s32 0, %v119
    %v121 = vrot.slane %v50, %v120
    %123 = vbcast.lane.b32.xlu0 %v121, 256
    %v124 = vpop.permute.xlu0 %123
    %v125 = vlaneseq
    %v126 = vshrl.u32 %v125, 7
    %v127 = vsub.s32 1, %v126
    %v128 = vrot.slane %v50, %v127
    %130 = vbcast.lane.b32.xlu0 %v128, 256
    %v131 = vpop.permute.xlu0 %130
    %v132 = vlaneseq
    %v133 = vshrl.u32 %v132, 7
    %v134 = vsub.s32 2, %v133
    %v135 = vrot.slane %v50, %v134
    %137 = vbcast.lane.b32.xlu0 %v135, 256
    %v138 = vpop.permute.xlu0 %137
    %v139 = vlaneseq
    %v140 = vshrl.u32 %v139, 7
    %v141 = vsub.s32 3, %v140
    %v142 = vrot.slane %v50, %v141
    %144 = vbcast.lane.b32.xlu0 %v142, 256
    %v145 = vpop.permute.xlu0 %144
    %v146 = vlaneseq
    %v147 = vshrl.u32 %v146, 7
    %v148 = vsub.s32 4, %v147
    %v149 = vrot.slane %v50, %v148
    %151 = vbcast.lane.b32.xlu0 %v149, 256
    %v152 = vpop.permute.xlu0 %151
    %v153 = vlaneseq
    %v154 = vshrl.u32 %v153, 7
    %v155 = vsub.s32 5, %v154
    %v156 = vrot.slane %v50, %v155
    %158 = vbcast.lane.b32.xlu0 %v156, 256
    %v159 = vpop.permute.xlu0 %158
    %v160 = vlaneseq
    %v161 = vshrl.u32 %v160, 7
    %v162 = vsub.s32 6, %v161
    %v163 = vrot.slane %v50, %v162
    %165 = vbcast.lane.b32.xlu0 %v163, 256
    %v166 = vpop.permute.xlu0 %165
    %v167 = vlaneseq
    %v168 = vshrl.u32 %v167, 7
    %v169 = vsub.s32 7, %v168
    %v170 = vrot.slane %v50, %v169
    %172 = vbcast.lane.b32.xlu0 %v170, 256
    %v173 = vpop.permute.xlu0 %172
    %v174 = vsel %vm110, %v124, 0.0
    %v175 = vsel %vm111, %v131, 0.0
    %v176 = vsel %vm112, %v138, 0.0
    %v177 = vsel %vm113, %v145, 0.0
    %v178 = vsel %vm114, %v152, 0.0
    %v179 = vsel %vm115, %v159, 0.0
    %v180 = vsel %vm116, %v166, 0.0
    %v181 = vsel %vm117, %v173, 0.0
    %vm182 = vcmask 523264
    %v183 = vsel %vm182, %v174, 0.0
    %v184 = vrot.slane %v183, 4
    %v185 = vadd.f32 %v183, %v184
    %v186 = vrot.slane %v185, 2
    %v187 = vadd.f32 %v185, %v186
    %v188 = vrot.slane %v187, 1
    %v189 = vadd.f32 %v187, %v188
    %v190 = vsel %vm182, %v175, 0.0
    %v191 = vrot.slane %v190, 4
    %v192 = vadd.f32 %v190, %v191
    %v193 = vrot.slane %v192, 2
    %v194 = vadd.f32 %v192, %v193
    %v195 = vrot.slane %v194, 1
    %v196 = vadd.f32 %v194, %v195
    %v197 = vsel %vm182, %v176, 0.0
    %v198 = vrot.slane %v197, 4
    %v199 = vadd.f32 %v197, %v198
    %v200 = vrot.slane %v199, 2
    %v201 = vadd.f32 %v199, %v200
    %v202 = vrot.slane %v201, 1
    %v203 = vadd.f32 %v201, %v202
    %v204 = vsel %vm182, %v177, 0.0
    %v205 = vrot.slane %v204, 4
    %v206 = vadd.f32 %v204, %v205
    %v207 = vrot.slane %v206, 2
    %v208 = vadd.f32 %v206, %v207
    %v209 = vrot.slane %v208, 1
    %v210 = vadd.f32 %v208, %v209
    %v211 = vsel %vm182, %v178, 0.0
    %v212 = vrot.slane %v211, 4
    %v213 = vadd.f32 %v211, %v212
    %v214 = vrot.slane %v213, 2
    %v215 = vadd.f32 %v213, %v214
    %v216 = vrot.slane %v215, 1
    %v217 = vadd.f32 %v215, %v216
    %v218 = vsel %vm182, %v179, 0.0
    %v219 = vrot.slane %v218, 4
    %v220 = vadd.f32 %v218, %v219
    %v221 = vrot.slane %v220, 2
    %v222 = vadd.f32 %v220, %v221
    %v223 = vrot.slane %v222, 1
    %v224 = vadd.f32 %v222, %v223
    %v225 = vsel %vm182, %v180, 0.0
    %v226 = vrot.slane %v225, 4
    %v227 = vadd.f32 %v225, %v226
    %v228 = vrot.slane %v227, 2
    %v229 = vadd.f32 %v227, %v228
    %v230 = vrot.slane %v229, 1
    %v231 = vadd.f32 %v229, %v230
    %v232 = vsel %vm182, %v181, 0.0
    %v233 = vrot.slane %v232, 4
    %v234 = vadd.f32 %v232, %v233
    %v235 = vrot.slane %v234, 2
    %v236 = vadd.f32 %v234, %v235
    %v237 = vrot.slane %v236, 1
    %v238 = vadd.f32 %v236, %v237
    %v239 = vld [vmem:[#allocation5] sm:$0xff]
    %v240 = vld [vmem:[#allocation2] sm:$0xff]
    %v241 = vld [vmem:[#allocation2 + $0x8] sm:$0xff]
    %v242 = vld [vmem:[#allocation2 + $0x10] sm:$0xff]
    %v243 = vld [vmem:[#allocation2 + $0x18] sm:$0xff]
    %v244 = vld [vmem:[#allocation2 + $0x20] sm:$0xff]
    %v245 = vld [vmem:[#allocation2 + $0x28] sm:$0xff]
    %v246 = vld [vmem:[#allocation2 + $0x30] sm:$0xff]
    %v247 = vld [vmem:[#allocation2 + $0x38] sm:$0xff]
    %vm256 = vcmask 1041409
    %v257 = vsel %vm256, %v196, %v189
    %vm258 = vcmask 1042434
    %v259 = vsel %vm258, %v203, %v257
    %vm260 = vcmask 1043459
    %v261 = vsel %vm260, %v210, %v259
    %vm262 = vcmask 1044484
    %v263 = vsel %vm262, %v217, %v261
    %vm264 = vcmask 1045509
    %v265 = vsel %vm264, %v224, %v263
    %vm266 = vcmask 1046534
    %v267 = vsel %vm266, %v231, %v265
    %vm268 = vcmask 1047559
    %v269 = vsel %vm268, %v238, %v267
    %v270 = vsel %vm182, %v269, 0
    %272 = vmatprep.subr.mxu0 0.0
    %273 = vmatpush1.msra.mxu0 %v240
    %274 = vmatprep.subr.mxu0 0.0
    %275 = vmatpush1.msra.mxu0 %v241
    %276 = vmatprep.subr.mxu0 0.0
    %277 = vmatpush1.msra.mxu0 %v242
    %278 = vmatprep.subr.mxu0 0.0
    %279 = vmatpush1.msra.mxu0 %v243
    %280 = vmatprep.subr.mxu0 0.0
    %281 = vmatpush1.msra.mxu0 %v244
    %282 = vmatprep.subr.mxu0 0.0
    %283 = vmatpush1.msra.mxu0 %v245
    %284 = vmatprep.subr.mxu0 0.0
    %285 = vmatpush1.msra.mxu0 %v246
    %286 = vmatprep.subr.mxu0 0.0
    %287 = vmatpush1.msra.mxu0 %v247
    %288 = vmatprep.subr.mxu0 0.0
    %289 = vmatpush1.msra.mxu0 0.0
    %290 = vmatprep.subr.mxu0 0.0
    %291 = vmatpush1.msra.mxu0 0.0
    %292 = vmatprep.subr.mxu0 0.0
    %293 = vmatpush1.msra.mxu0 0.0
    %294 = vmatprep.subr.mxu0 0.0
    %295 = vmatpush1.msra.mxu0 0.0
    %296 = vmatprep.subr.mxu0 0.0
    %297 = vmatpush1.msra.mxu0 0.0
    %298 = vmatprep.subr.mxu0 0.0
    %299 = vmatpush1.msra.mxu0 0.0
    %300 = vmatprep.subr.mxu0 0.0
    %301 = vmatpush1.msra.mxu0 0.0
    %302 = vmatprep.subr.mxu0 0.0
    %303 = vmatpush1.msra.mxu0 0.0
    %304 = vmatprep.subr.mxu0 0.0
    %305 = vmatpush1.msra.mxu0 0.0
    %306 = vmatprep.subr.mxu0 0.0
    %307 = vmatpush1.msra.mxu0 0.0
    %308 = vmatprep.subr.mxu0 0.0
    %309 = vmatpush1.msra.mxu0 0.0
    %310 = vmatprep.subr.mxu0 0.0
    %311 = vmatpush1.msra.mxu0 0.0
    %312 = vmatprep.subr.mxu0 0.0
    %313 = vmatpush1.msra.mxu0 0.0
    %314 = vmatprep.subr.mxu0 0.0
    %315 = vmatpush1.msra.mxu0 0.0
    %316 = vmatprep.subr.mxu0 0.0
    %317 = vmatpush1.msra.mxu0 0.0
    %318 = vmatprep.subr.mxu0 0.0
    %319 = vmatpush1.msra.mxu0 0.0
    %320 = vmatprep.subr.mxu0 0.0
    %321 = vmatpush1.msra.mxu0 0.0
    %322 = vmatprep.subr.mxu0 0.0
    %323 = vmatpush1.msra.mxu0 0.0
    %324 = vmatprep.subr.mxu0 0.0
    %325 = vmatpush1.msra.mxu0 0.0
    %326 = vmatprep.subr.mxu0 0.0
    %327 = vmatpush1.msra.mxu0 0.0
    %328 = vmatprep.subr.mxu0 0.0
    %329 = vmatpush1.msra.mxu0 0.0
    %330 = vmatprep.subr.mxu0 0.0
    %331 = vmatpush1.msra.mxu0 0.0
    %332 = vmatprep.subr.mxu0 0.0
    %333 = vmatpush1.msra.mxu0 0.0
    %334 = vmatprep.subr.mxu0 0.0
    %335 = vmatpush1.msra.mxu0 0.0
    %336 = vmatprep.mubr.f32.mxu0 0.0
    %337 = vmatmul.mubr.f32.gmra.mrb[0].mxu0 %v270
    %v338 = vpop.f32.mrb[0].mxu0
    %v339 = vadd.f32 0.0, %v338
    %v340 = vpop.f32.mrb[0].mxu0
    %341 = vdwg.mxu0
    %v342 = vadd.f32 %v239, %v339
    %343 = vst [vmem:[#allocation5] sm:$0xff] %v342
    // Predicated region
    $region22: #{tpu_custom_call.1} parent=1 // pred_check
      _
    $region23: #{tpu_custom_call.1} parent=1 // pred_check_branch
      %345 = sbr.rel (0) target = $region25
    $region24: #{tpu_custom_call.1} parent=1 // pred_region
      %s347 = ssub.s32 128, 128
      %348 = vsyncadd [#allocation4], %s347
      %s350 = sshll.u32 [#allocation5], 4
      %s351 = int_to_ptr.vmem [resolvable:$true] %s350
      %353 = dma.vmem_to_hbm [thread:$0]  %s351, 128, %s3, [#allocation4]
    $region25: #{tpu_custom_call.1} parent=1 // pred_fallthru
      _
    // Predicated region
    $region26: #{tpu_custom_call.1} parent=1 // pred_check
      _
    $region27: #{tpu_custom_call.1} parent=1 // pred_check_branch
      %355 = sbr.rel (0) target = $region29
    $region28: #{tpu_custom_call.1} parent=1 // pred_region
      %356 = dma.done [#allocation4], 128
    $region29: #{tpu_custom_call.1} parent=1 // pred_fallthru
      _
    %357 = vsyncpa [#allocation3], 1
    %358 = vsyncpa [#allocation4], 1

</llo_original>
